<compile_context>
chip_gen: v7x
topology: tpu7x:2x2x1
jax: 0.10.0
libtpu: 0.0.40
codegen_flags: <defaults>
</compile_context>

<pallas_src>
import math
import functools

import jax
import jax.numpy as jnp
import numpy as np
from jax.experimental import pallas as pl
from jax.experimental.pallas import tpu as pltpu


def _round_up(x, m):
    return ((x + m - 1) // m) * m


# ----------------------------------------------------------------------------
# Kernel 1 (fused): encoder matmul + in-VMEM positional gather (one-hot matmul)
#                   + token zeroing + student/teacher projections
# ----------------------------------------------------------------------------
def _data2vec_fused_kernel(x_ref, idx_ref, keep_ref,
                           wenc_ref, pos_ref, ws_ref, bs_ref, wt_ref, bt_ref,
                           x_out_ref, y_out_ref):
    # encoder (no_grad in torch): flatten(C,T) @ W_enc ; sqrt(d_model) is
    # already folded into W_enc. bf16 operands, f32 accumulation on the MXU.
    enc = jnp.dot(x_ref[...], wenc_ref[...], preferred_element_type=jnp.float32)

    # positional lookup against the resident pos table: one-hot(idx) @ pos_emb
    # on the MXU.  Exact selection (single nonzero bf16 term per row), and the
    # MXU has plenty of slack in this memory-bound kernel.
    idx = idx_ref[...]                                               # (tm, 1) i32
    mp = pos_ref.shape[0]
    iota = jax.lax.broadcasted_iota(jnp.int32, (idx.shape[0], mp), 1)
    onehot = jnp.where(iota == idx, 1.0, 0.0).astype(jnp.bfloat16)   # (tm, MP)
    pos = jnp.dot(onehot, pos_ref[...], preferred_element_type=jnp.float32)

    student = enc * keep_ref[...]                                    # studentSrc[tknMsk] = 0

    # student model (linear stand-in for the injected transformer)
    x_out_ref[...] = (
        jnp.dot((student + pos).astype(jnp.bfloat16), ws_ref[...],
                preferred_element_type=jnp.float32) + bs_ref[...]
    ).astype(x_out_ref.dtype)

    # teacher (EMA) model on the unmasked representation (no_grad in torch);
    # stored bf16 to halve the writeback of the no-grad regression target.
    y_out_ref[...] = (
        jnp.dot((enc + pos).astype(jnp.bfloat16), wt_ref[...],
                preferred_element_type=jnp.float32) + bt_ref[...]
    ).astype(y_out_ref.dtype)
    # TODO(synk): `msk` would additionally drive attention masking inside the
    # real injected transformer; the linear stand-in has no attention to mask.


def data2vec_fused(x_flat, idx2d, keep, w_enc, pos_emb, ws, bs, wt, bt, *, tm):
    """x_flat (BSp,Fp) bf16, idx2d (BSp,1) i32, keep (BSp,1) f32,
    w_enc (Fp,D) bf16, pos_emb (MP,D) bf16, ws/wt (D,D) bf16, bs/bt (1,D) f32
    -> x (BSp,D) f32, y (BSp,D) bf16."""
    BSp, Fp = x_flat.shape
    D = w_enc.shape[1]
    MP = pos_emb.shape[0]
    assert BSp % tm == 0

    # VMEM budget: resident weights/pos table + double-buffered activation tiles.
    resident = (Fp * D + MP * D + 2 * D * D) * 2 + 2 * D * 4          # bytes
    single_buffer_weights = 2 * resident > (16 << 20)                 # only when it matters
    acts = tm * Fp * 2 + 2 * tm * 128 * 4 + tm * D * 4 + tm * D * 2   # in + out tiles
    need = (1 if single_buffer_weights else 2) * resident + 2 * acts
    vmem_limit = int(min(max(need * 3 // 2 + (4 << 20), 32 << 20), 96 << 20))
    # TODO(synk): for D >= ~2048 on v7x, add an output-feature grid axis for
    # ws/wt instead of keeping both fully resident (64 MiB VMEM per TC).

    def resident_spec(shape):
        if single_buffer_weights:
            # constant-index blocks: single-buffer them to halve weight residency.
            return pl.BlockSpec(shape, lambda i: (0, 0),
                                pipeline_mode=pl.Buffered(1))
        return pl.BlockSpec(shape, lambda i: (0, 0))

    return pl.pallas_call(
        _data2vec_fused_kernel,
        out_shape=(
            jax.ShapeDtypeStruct((BSp, D), jnp.float32),
            jax.ShapeDtypeStruct((BSp, D), jnp.bfloat16),
        ),
        grid=(BSp // tm,),
        in_specs=[
            pl.BlockSpec((tm, Fp), lambda i: (i, 0)),    # src rows  (token tile)
            pl.BlockSpec((tm, 1), lambda i: (i, 0)),     # idx       (token tile)
            pl.BlockSpec((tm, 1), lambda i: (i, 0)),     # keep      (token tile)
            resident_spec((Fp, D)),                      # W_enc     (resident)
            resident_spec((MP, D)),                      # pos table (resident)
            resident_spec((D, D)),                       # W_student (resident)
            resident_spec((1, D)),                       # b_student (resident)
            resident_spec((D, D)),                       # W_teacher (resident)
            resident_spec((1, D)),                       # b_teacher (resident)
        ],
        out_specs=[
            pl.BlockSpec((tm, D), lambda i: (i, 0)),     # x (student output, f32)
            pl.BlockSpec((tm, D), lambda i: (i, 0)),     # y (teacher target, bf16)
        ],
        compiler_params=pltpu.CompilerParams(
            dimension_semantics=("parallel",),
            vmem_limit_bytes=vmem_limit,
        ),
    )(x_flat, idx2d, keep, w_enc, pos_emb, ws, bs, wt, bt)


# ----------------------------------------------------------------------------
# Kernel 2: EMA step   teacher <- decay*teacher + (1-decay)*student
#           (f32 masters, row-tiled streaming, updated in place via aliasing)
# ----------------------------------------------------------------------------
def _ema_kernel(old_ref, new_ref, out_ref, *, decay):
    out_ref[...] = decay * old_ref[...] + (1.0 - decay) * new_ref[...]


def ema_update(old, new, decay):
    R, C = old.shape
    tr = 256 if R % 256 == 0 else (128 if R % 128 == 0 else R)
    return pl.pallas_call(
        functools.partial(_ema_kernel, decay=decay),
        out_shape=jax.ShapeDtypeStruct((R, C), old.dtype),
        grid=(R // tr,),
        in_specs=[
            pl.BlockSpec((tr, C), lambda i: (i, 0)),
            pl.BlockSpec((tr, C), lambda i: (i, 0)),
        ],
        out_specs=pl.BlockSpec((tr, C), lambda i: (i, 0)),
        input_output_aliases={0: 0},   # update the teacher master in place
        compiler_params=pltpu.CompilerParams(
            dimension_semantics=("parallel",),
        ),
    )(old, new)


# ----------------------------------------------------------------------------
# Parameter init + forward wrapper (glue)
# ----------------------------------------------------------------------------
def init_params(key, *, C, T, d_model, max_pos):
    k1, k2, k3 = jax.random.split(key, 3)
    # sqrt(d_model) folded into W_enc once at init (no per-tile multiply).
    w_enc = (0.02 * jax.random.normal(k1, (C * T, d_model), jnp.float32)
             * math.sqrt(d_model))
    pos_emb = 0.02 * jax.random.normal(k2, (max_pos, d_model), jnp.float32)
    w_student = 0.02 * jax.random.normal(k3, (d_model, d_model), jnp.float32)
    b_student = jnp.zeros((1, d_model), jnp.float32)
    # EMA(model) is initialized as a copy of the student model.
    return {
        "w_enc": w_enc,
        "pos_emb": pos_emb,
        "w_student": w_student,
        "b_student": b_student,
        "w_teacher": w_student,
        "b_teacher": b_student,
    }


def data2vec_forward(params, src, idx, msk, *, rng_key,
                     decay=0.999, p=20, q=100, tm=512):
    B, S, C, T = src.shape
    assert src.shape[0] == idx.shape[0] and src.shape[1] == idx.shape[1]
    D = params["w_enc"].shape[1]
    assert D % 128 == 0, "d_model must be a multiple of 128 (lane width)"
    BS = B * S

    # tknMsk = (randint(0, q-1, (B,S)) < p) & msk   -> keep factor (1=keep, 0=zero)
    # TODO(synk): could use the in-kernel HW PRNG (pltpu.prng_seed/prng_random_bits)
    # on real hardware; msk still has to be streamed per token, so no traffic win.
    rnd = jax.random.randint(rng_key, (B, S), 0, q - 1, dtype=jnp.int32)
    tknMsk = jnp.logical_and(rnd < p, msk)
    keep = jnp.where(tknMsk, 0.0, 1.0).reshape(BS, 1).astype(jnp.float32)

    # token tile: multiple of 16 (bf16 sublane packing); pad BS instead of
    # collapsing the grid so pipelining / the "parallel" axis always survive.
    tm_eff = min(tm, _round_up(BS, 16))
    BSp = _round_up(BS, tm_eff)
    # lane-dense feature axis for the encoder matmul.
    F = C * T
    Fp = _round_up(F, 128)

    x_flat = src.reshape(BS, F).astype(jnp.bfloat16)
    x_flat = jnp.pad(x_flat, ((0, BSp - BS), (0, Fp - F)))
    idx2d = jnp.pad(idx.reshape(BS, 1).astype(jnp.int32), ((0, BSp - BS), (0, 0)))
    keep = jnp.pad(keep, ((0, BSp - BS), (0, 0)), constant_values=1.0)

    # bf16 operands for the MXU (f32 master params kept for the EMA update).
    w_enc = jnp.pad(params["w_enc"].astype(jnp.bfloat16), ((0, Fp - F), (0, 0)))
    pos_emb = params["pos_emb"].astype(jnp.bfloat16)
    ws = params["w_student"].astype(jnp.bfloat16)
    wt = params["w_teacher"].astype(jnp.bfloat16)

    x, y = data2vec_fused(
        x_flat, idx2d, keep, w_enc, pos_emb,
        ws, params["b_student"], wt, params["b_teacher"], tm=tm_eff,
    )
    x = x[:BS].reshape(B, S, D)
    y = y[:BS].reshape(B, S, D)

    # self.ema.step(self.model): functional EMA update of the f32 teacher masters.
    new_wt = ema_update(params["w_teacher"], params["w_student"], decay)
    new_bt = ema_update(params["b_teacher"], params["b_student"], decay)

    return (x, y, tknMsk), {"w_teacher": new_wt, "b_teacher": new_bt}


if __name__ == "__main__":
    # small shapes consistent with the module; d_model chosen 128-aligned.
    B, S, C, T = 2, 8, 4, 16
    D_MODEL = 128
    P, Q, DECAY = 20, 100, 0.999

    key = jax.random.PRNGKey(0)
    k_param, k_src, k_msk = jax.random.split(key, 3)

    params = init_params(k_param, C=C, T=T, d_model=D_MODEL, max_pos=S)
    src = jax.random.normal(k_src, (B, S, C, T), jnp.float32)
    idx = jnp.tile(jnp.arange(S, dtype=jnp.int32)[None, :], (B, 1))
    msk = jnp.ones((B, S), dtype=jnp.bool_)

    # ---- pure-JAX reference (same bf16 casts / f32 accumulation), computed
    #      BEFORE the kernels since the EMA kernel aliases the teacher masters.
    BS = B * S
    x_flat_ref = src.reshape(BS, C * T).astype(jnp.bfloat16)
    enc_ref = jnp.dot(x_flat_ref, params["w_enc"].astype(jnp.bfloat16),
                      preferred_element_type=jnp.float32)
    pos_ref = params["pos_emb"].astype(jnp.bfloat16).astype(jnp.float32)[idx.reshape(-1)]
    rnd_ref = jax.random.randint(k_msk, (B, S), 0, Q - 1, dtype=jnp.int32)
    tkn_ref = jnp.logical_and(rnd_ref < P, msk)
    keep_ref = jnp.where(tkn_ref, 0.0, 1.0).reshape(BS, 1)
    student_ref = enc_ref * keep_ref
    x_ref = (jnp.dot((student_ref + pos_ref).astype(jnp.bfloat16),
                     params["w_student"].astype(jnp.bfloat16),
                     preferred_element_type=jnp.float32)
             + params["b_student"]).reshape(B, S, D_MODEL)
    y_ref = ((jnp.dot((enc_ref + pos_ref).astype(jnp.bfloat16),
                      params["w_teacher"].astype(jnp.bfloat16),
                      preferred_element_type=jnp.float32)
              + params["b_teacher"]).astype(jnp.bfloat16)
             ).astype(jnp.float32).reshape(B, S, D_MODEL)
    wt_ref = DECAY * params["w_teacher"] + (1.0 - DECAY) * params["w_student"]
    bt_ref = DECAY * params["b_teacher"] + (1.0 - DECAY) * params["b_student"]
    (x_ref, y_ref, wt_ref, bt_ref, tkn_ref) = jax.block_until_ready(
        (x_ref, y_ref, wt_ref, bt_ref, tkn_ref))

    # ---- Pallas kernels ----
    (x, y, tknMsk), new_teacher = data2vec_forward(
        params, src, idx, msk, rng_key=k_msk, decay=DECAY, p=P, q=Q,
    )
    jax.block_until_ready((x, y, tknMsk,
                           new_teacher["w_teacher"], new_teacher["b_teacher"]))

    np.testing.assert_allclose(np.asarray(x), np.asarray(x_ref),
                               rtol=5e-2, atol=5e-2)
    np.testing.assert_allclose(np.asarray(jnp.asarray(y, jnp.float32)),
                               np.asarray(y_ref), rtol=5e-2, atol=5e-2)
    np.testing.assert_allclose(np.asarray(new_teacher["w_teacher"]),
                               np.asarray(wt_ref), rtol=1e-5, atol=1e-6)
    np.testing.assert_allclose(np.asarray(new_teacher["b_teacher"]),
                               np.asarray(bt_ref), rtol=1e-5, atol=1e-6)
    assert bool(jnp.all(tknMsk == tkn_ref))
    assert x.shape == (B, S, D_MODEL)
    assert y.shape == (B, S, D_MODEL)
    assert tknMsk.shape == (B, S)
    print("KERNEL_OK")
</pallas_src>

<mosaic_0001>
module attributes {stable_mosaic.version = 11 : i64} {
  func.func @_data2vec_fused_kernel(%arg0: i32, %arg1: memref<16x128xbf16, #tpu.memory_space<vmem>>, %arg2: memref<16x1xi32, #tpu.memory_space<vmem>>, %arg3: memref<16x1xf32, #tpu.memory_space<vmem>>, %arg4: memref<128x128xbf16, #tpu.memory_space<vmem>>, %arg5: memref<8x128xbf16, #tpu.memory_space<vmem>>, %arg6: memref<128x128xbf16, #tpu.memory_space<vmem>>, %arg7: memref<1x128xf32, #tpu.memory_space<vmem>>, %arg8: memref<128x128xbf16, #tpu.memory_space<vmem>>, %arg9: memref<1x128xf32, #tpu.memory_space<vmem>>, %arg10: memref<16x128xf32, #tpu.memory_space<vmem>>, %arg11: memref<16x128xbf16, #tpu.memory_space<vmem>>) attributes {dimension_semantics = [#tpu.dimension_semantics<parallel>], iteration_bounds = array<i64: 1>, scalar_prefetch = 0 : i64, scratch_operands = 0 : i64, tpu.core_type = #tpu.core_type<tc>, window_params = [{transform_indices = @transform_0, window_bounds = array<i64: 16, 128>}, {transform_indices = @transform_1, window_bounds = array<i64: 16, 1>}, {transform_indices = @transform_2, window_bounds = array<i64: 16, 1>}, {pipeline_mode = #tpu.pipeline_mode<synchronous>, transform_indices = @transform_3, window_bounds = array<i64: 128, 128>}, {pipeline_mode = #tpu.pipeline_mode<synchronous>, transform_indices = @transform_4, window_bounds = array<i64: 8, 128>}, {pipeline_mode = #tpu.pipeline_mode<synchronous>, transform_indices = @transform_5, window_bounds = array<i64: 128, 128>}, {pipeline_mode = #tpu.pipeline_mode<synchronous>, transform_indices = @transform_6, window_bounds = array<i64: 1, 128>}, {pipeline_mode = #tpu.pipeline_mode<synchronous>, transform_indices = @transform_7, window_bounds = array<i64: 128, 128>}, {pipeline_mode = #tpu.pipeline_mode<synchronous>, transform_indices = @transform_8, window_bounds = array<i64: 1, 128>}, {transform_indices = @transform_9, window_bounds = array<i64: 16, 128>}, {transform_indices = @transform_10, window_bounds = array<i64: 16, 128>}]} {
    %c0 = arith.constant 0 : index
    %c0_0 = arith.constant 0 : index
    %0 = vector.load %arg1[%c0, %c0_0] : memref<16x128xbf16, #tpu.memory_space<vmem>>, vector<16x128xbf16>
    %c0_1 = arith.constant 0 : index
    %c0_2 = arith.constant 0 : index
    %1 = vector.load %arg4[%c0_1, %c0_2] : memref<128x128xbf16, #tpu.memory_space<vmem>>, vector<128x128xbf16>
    %cst = arith.constant dense<0.000000e+00> : vector<16x128xf32>
    %2 = tpu.matmul %0, %1, %cst {dimension_numbers = #tpu.dot_dimension_numbers<[1], [0], [0], [1], [0, 0, 1, 1], [], []>} : vector<16x128xbf16>, vector<128x128xbf16>, vector<16x128xf32> -> vector<16x128xf32>
    %c0_3 = arith.constant 0 : index
    %c0_4 = arith.constant 0 : index
    %3 = vector.load %arg2[%c0_3, %c0_4] : memref<16x1xi32, #tpu.memory_space<vmem>>, vector<16x1xi32>
    %4 = tpu.iota {dimensions = array<i32: 1>} : vector<16x8xi32>
    %5 = vector.broadcast %3 : vector<16x1xi32> to vector<16x8xi32>
    %6 = arith.cmpi eq, %4, %5 : vector<16x8xi32>
    %cst_5 = arith.constant 1.000000e+00 : f32
    %cst_6 = arith.constant 0.000000e+00 : f32
    %7 = vector.broadcast %cst_5 : f32 to vector<16x8xf32>
    %8 = vector.broadcast %cst_6 : f32 to vector<16x8xf32>
    %9 = arith.select %6, %7, %8 : vector<16x8xi1>, vector<16x8xf32>
    %10 = arith.truncf %9 : vector<16x8xf32> to vector<16x8xbf16>
    %c0_7 = arith.constant 0 : index
    %c0_8 = arith.constant 0 : index
    %11 = vector.load %arg5[%c0_7, %c0_8] : memref<8x128xbf16, #tpu.memory_space<vmem>>, vector<8x128xbf16>
    %cst_9 = arith.constant dense<0.000000e+00> : vector<16x128xf32>
    %12 = tpu.matmul %10, %11, %cst_9 {dimension_numbers = #tpu.dot_dimension_numbers<[1], [0], [0], [1], [0, 0, 1, 1], [], []>} : vector<16x8xbf16>, vector<8x128xbf16>, vector<16x128xf32> -> vector<16x128xf32>
    %c0_10 = arith.constant 0 : index
    %c0_11 = arith.constant 0 : index
    %13 = vector.load %arg3[%c0_10, %c0_11] : memref<16x1xf32, #tpu.memory_space<vmem>>, vector<16x1xf32>
    %14 = vector.broadcast %13 : vector<16x1xf32> to vector<16x128xf32>
    %15 = arith.mulf %2, %14 : vector<16x128xf32>
    %16 = arith.addf %15, %12 : vector<16x128xf32>
    %17 = arith.truncf %16 : vector<16x128xf32> to vector<16x128xbf16>
    %c0_12 = arith.constant 0 : index
    %c0_13 = arith.constant 0 : index
    %18 = vector.load %arg6[%c0_12, %c0_13] : memref<128x128xbf16, #tpu.memory_space<vmem>>, vector<128x128xbf16>
    %cst_14 = arith.constant dense<0.000000e+00> : vector<16x128xf32>
    %19 = tpu.matmul %17, %18, %cst_14 {dimension_numbers = #tpu.dot_dimension_numbers<[1], [0], [0], [1], [0, 0, 1, 1], [], []>} : vector<16x128xbf16>, vector<128x128xbf16>, vector<16x128xf32> -> vector<16x128xf32>
    %c0_15 = arith.constant 0 : index
    %c0_16 = arith.constant 0 : index
    %20 = vector.load %arg7[%c0_15, %c0_16] : memref<1x128xf32, #tpu.memory_space<vmem>>, vector<1x128xf32>
    %21 = vector.broadcast %20 : vector<1x128xf32> to vector<16x128xf32>
    %22 = arith.addf %19, %21 : vector<16x128xf32>
    %c0_17 = arith.constant 0 : index
    %c0_18 = arith.constant 0 : index
    %23 = vector.load %arg10[%c0_17, %c0_18] : memref<16x128xf32, #tpu.memory_space<vmem>>, vector<16x128xf32>
    tpu.vector_store %arg10[%c0_17, %c0_18], %22 {strides = array<i32>} : memref<16x128xf32, #tpu.memory_space<vmem>>, vector<16x128xf32>,
    %24 = arith.addf %2, %12 : vector<16x128xf32>
    %25 = arith.truncf %24 : vector<16x128xf32> to vector<16x128xbf16>
    %c0_19 = arith.constant 0 : index
    %c0_20 = arith.constant 0 : index
    %26 = vector.load %arg8[%c0_19, %c0_20] : memref<128x128xbf16, #tpu.memory_space<vmem>>, vector<128x128xbf16>
    %cst_21 = arith.constant dense<0.000000e+00> : vector<16x128xf32>
    %27 = tpu.matmul %25, %26, %cst_21 {dimension_numbers = #tpu.dot_dimension_numbers<[1], [0], [0], [1], [0, 0, 1, 1], [], []>} : vector<16x128xbf16>, vector<128x128xbf16>, vector<16x128xf32> -> vector<16x128xf32>
    %c0_22 = arith.constant 0 : index
    %c0_23 = arith.constant 0 : index
    %28 = vector.load %arg9[%c0_22, %c0_23] : memref<1x128xf32, #tpu.memory_space<vmem>>, vector<1x128xf32>
    %29 = vector.broadcast %28 : vector<1x128xf32> to vector<16x128xf32>
    %30 = arith.addf %27, %29 : vector<16x128xf32>
    %31 = arith.truncf %30 : vector<16x128xf32> to vector<16x128xbf16>
    %c0_24 = arith.constant 0 : index
    %c0_25 = arith.constant 0 : index
    %32 = vector.load %arg11[%c0_24, %c0_25] : memref<16x128xbf16, #tpu.memory_space<vmem>>, vector<16x128xbf16>
    tpu.vector_store %arg11[%c0_24, %c0_25], %31 {strides = array<i32>} : memref<16x128xbf16, #tpu.memory_space<vmem>>, vector<16x128xbf16>,
    return
  }
  func.func @transform_0(%arg0: i32) -> (i32, i32) {
    %c0_i32 = arith.constant 0 : i32
    %c0_i32_0 = arith.constant 0 : i32
    return %arg0, %c0_i32 : i32, i32
  }
  func.func @transform_1(%arg0: i32) -> (i32, i32) {
    %c0_i32 = arith.constant 0 : i32
    %c0_i32_0 = arith.constant 0 : i32
    return %arg0, %c0_i32 : i32, i32
  }
  func.func @transform_2(%arg0: i32) -> (i32, i32) {
    %c0_i32 = arith.constant 0 : i32
    %c0_i32_0 = arith.constant 0 : i32
    return %arg0, %c0_i32 : i32, i32
  }
  func.func @transform_3(%arg0: i32) -> (i32, i32) {
    %c0_i32 = arith.constant 0 : i32
    %c0_i32_0 = arith.constant 0 : i32
    %c0_i32_1 = arith.constant 0 : i32
    return %c0_i32, %c0_i32_0 : i32, i32
  }
  func.func @transform_4(%arg0: i32) -> (i32, i32) {
    %c0_i32 = arith.constant 0 : i32
    %c0_i32_0 = arith.constant 0 : i32
    %c0_i32_1 = arith.constant 0 : i32
    return %c0_i32, %c0_i32_0 : i32, i32
  }
  func.func @transform_5(%arg0: i32) -> (i32, i32) {
    %c0_i32 = arith.constant 0 : i32
    %c0_i32_0 = arith.constant 0 : i32
    %c0_i32_1 = arith.constant 0 : i32
    return %c0_i32, %c0_i32_0 : i32, i32
  }
  func.func @transform_6(%arg0: i32) -> (i32, i32) {
    %c0_i32 = arith.constant 0 : i32
    %c0_i32_0 = arith.constant 0 : i32
    %c0_i32_1 = arith.constant 0 : i32
    return %c0_i32, %c0_i32_0 : i32, i32
  }
  func.func @transform_7(%arg0: i32) -> (i32, i32) {
    %c0_i32 = arith.constant 0 : i32
    %c0_i32_0 = arith.constant 0 : i32
    %c0_i32_1 = arith.constant 0 : i32
    return %c0_i32, %c0_i32_0 : i32, i32
  }
  func.func @transform_8(%arg0: i32) -> (i32, i32) {
    %c0_i32 = arith.constant 0 : i32
    %c0_i32_0 = arith.constant 0 : i32
    %c0_i32_1 = arith.constant 0 : i32
    return %c0_i32, %c0_i32_0 : i32, i32
  }
  func.func @transform_9(%arg0: i32) -> (i32, i32) {
    %c0_i32 = arith.constant 0 : i32
    %c0_i32_0 = arith.constant 0 : i32
    return %arg0, %c0_i32 : i32, i32
  }
  func.func @transform_10(%arg0: i32) -> (i32, i32) {
    %c0_i32 = arith.constant 0 : i32
    %c0_i32_0 = arith.constant 0 : i32
    return %arg0, %c0_i32 : i32, i32
  }
}

</mosaic_0001>

<llo_original>
// kernel: tpu_custom_call.1
$region0: #{tpu_custom_call.1}
  #allocation0 [shape = 'u32[]', space=smem, size = 0x4, offset = 0x4, fixed_abs, tag = 'smem constant byte address 0x4 - core index']
  #allocation1 [shape = 'u32[144,128]{1,0:T(1,128)}', space=vmem, size = 0x12000, scoped, tag = 'internal scratch']
  %s0 = inlined_call_operand.vmem [shape: bf16[16,128], index: 0, kind: input, shape index: {}]
  %s1 = inlined_call_operand.vmem [shape: s32[16,1], index: 1, kind: input, shape index: {}]
  %s2 = inlined_call_operand.vmem [shape: f32[16,1], index: 2, kind: input, shape index: {}]
  %s3 = inlined_call_operand.hbm [shape: bf16[128,128], index: 3, kind: input, shape index: {}]
  %s4 = inlined_call_operand.vmem [shape: bf16[8,128], index: 4, kind: input, shape index: {}]
  %s5 = inlined_call_operand.hbm [shape: bf16[128,128], index: 5, kind: input, shape index: {}]
  %s6 = inlined_call_operand.vmem [shape: f32[1,128], index: 6, kind: input, shape index: {}]
  %s7 = inlined_call_operand.hbm [shape: bf16[128,128], index: 7, kind: input, shape index: {}]
  %s8 = inlined_call_operand.vmem [shape: f32[1,128], index: 8, kind: input, shape index: {}]
  %s9 = inlined_call_operand.hbm [shape: f32[16,128], index: 9, kind: output, shape index: {0}]
  %s10 = inlined_call_operand.hbm [shape: bf16[16,128], index: 10, kind: output, shape index: {1}]
  %11 = xla_tuple %s9, %s10
  %s12 = sld [smem:[#allocation0]]
  $region66: #{tpu_custom_call.1} parent=0
    _
  %s14 = ssub.s32 1, %s12
  %s15 = scalar_select 0, %s14, %s12
  $region1: #{tpu_custom_call.1} parent=0
    #allocation2 [shape = 'u8[32768]{0}', space=vmem, size = 0x8000, scoped, tag = 'input window, operand 3, single buffered']
    #allocation3 [shape = 's32[1]{0}', space=sflag, size = 0x4, scoped, tag = 'scoped memory for tpu_custom_call.1']
    #allocation4 [shape = 's32[1]{0}', space=sflag, size = 0x4, scoped, tag = 'scoped memory for tpu_custom_call.1']
    #allocation5 [shape = 'u8[32768]{0}', space=vmem, size = 0x8000, scoped, tag = 'input window, operand 5, single buffered']
    #allocation6 [shape = 's32[1]{0}', space=sflag, size = 0x4, scoped, tag = 'scoped memory for tpu_custom_call.1']
    #allocation7 [shape = 'u8[32768]{0}', space=vmem, size = 0x8000, scoped, tag = 'input window, operand 7, single buffered']
    #allocation8 [shape = 'u8[8192]{0}', space=vmem, size = 0x2000, scoped, tag = 'output window, operand 0, single buffered']
    #allocation9 [shape = 'u8[4096]{0}', space=vmem, size = 0x1000, scoped, tag = 'output window, operand 1, single buffered']
    #allocation10 [shape = 's32[1]{0}', space=sflag, size = 0x4, scoped, tag = 'scoped memory for tpu_custom_call.1']
    %16 = vsyncpa [#allocation3], 0
    %17 = vsyncpa [#allocation6], 0
    %18 = vsyncpa [#allocation4], 0
    %19 = vsyncpa [#allocation10], 0
    // Predicated region
    $region2: #{tpu_custom_call.1} parent=1 // pred_check
      _
    $region3: #{tpu_custom_call.1} parent=1 // pred_check_branch
      %21 = sbr.rel (0) target = $region5
    $region4: #{tpu_custom_call.1} parent=1 // pred_region
      _
    $region5: #{tpu_custom_call.1} parent=1 // pred_fallthru
      _
    // Predicated region
    $region6: #{tpu_custom_call.1} parent=1 // pred_check
      _
    $region7: #{tpu_custom_call.1} parent=1 // pred_check_branch
      %23 = sbr.rel (0) target = $region9
    $region8: #{tpu_custom_call.1} parent=1 // pred_region
      _
    $region9: #{tpu_custom_call.1} parent=1 // pred_fallthru
      _
    // Predicated region
    $region10: #{tpu_custom_call.1} parent=1 // pred_check
      _
    $region11: #{tpu_custom_call.1} parent=1 // pred_check_branch
      %25 = sbr.rel (0) target = $region13
    $region12: #{tpu_custom_call.1} parent=1 // pred_region
      _
    $region13: #{tpu_custom_call.1} parent=1 // pred_fallthru
      _
    // Predicated region
    $region14: #{tpu_custom_call.1} parent=1 // pred_check
      _
    $region15: #{tpu_custom_call.1} parent=1 // pred_check_branch
      %27 = sbr.rel (0) target = $region17
    $region16: #{tpu_custom_call.1} parent=1 // pred_region
      %s29 = ssub.s32 1024, 1024
      %30 = vsyncadd [#allocation3], %s29
      %s31 = sshll.u32 [#allocation2], 4
      %s32 = int_to_ptr.vmem [resolvable:$true] %s31
      %37 = dma.hbm_to_vmem [thread:$0]  %s3, 1024, %s32, [#allocation3], 64, 64, 4
    $region17: #{tpu_custom_call.1} parent=1 // pred_fallthru
      _
    // Predicated region
    $region18: #{tpu_custom_call.1} parent=1 // pred_check
      _
    $region19: #{tpu_custom_call.1} parent=1 // pred_check_branch
      %39 = sbr.rel (0) target = $region21
    $region20: #{tpu_custom_call.1} parent=1 // pred_region
      _
    $region21: #{tpu_custom_call.1} parent=1 // pred_fallthru
      _
    // Predicated region
    $region22: #{tpu_custom_call.1} parent=1 // pred_check
      _
    $region23: #{tpu_custom_call.1} parent=1 // pred_check_branch
      %41 = sbr.rel (0) target = $region25
    $region24: #{tpu_custom_call.1} parent=1 // pred_region
      %s43 = ssub.s32 1024, 1024
      %44 = vsyncadd [#allocation6], %s43
      %s45 = sshll.u32 [#allocation5], 4
      %s46 = int_to_ptr.vmem [resolvable:$true] %s45
      %51 = dma.hbm_to_vmem [thread:$0]  %s5, 1024, %s46, [#allocation6], 64, 64, 4
    $region25: #{tpu_custom_call.1} parent=1 // pred_fallthru
      _
    // Predicated region
    $region26: #{tpu_custom_call.1} parent=1 // pred_check
      _
    $region27: #{tpu_custom_call.1} parent=1 // pred_check_branch
      %53 = sbr.rel (0) target = $region29
    $region28: #{tpu_custom_call.1} parent=1 // pred_region
      _
    $region29: #{tpu_custom_call.1} parent=1 // pred_fallthru
      _
    // Predicated region
    $region30: #{tpu_custom_call.1} parent=1 // pred_check
      _
    $region31: #{tpu_custom_call.1} parent=1 // pred_check_branch
      %55 = sbr.rel (0) target = $region33
    $region32: #{tpu_custom_call.1} parent=1 // pred_region
      %s57 = ssub.s32 1024, 1024
      %58 = vsyncadd [#allocation6], %s57
      %s59 = sshll.u32 [#allocation7], 4
      %s60 = int_to_ptr.vmem [resolvable:$true] %s59
      %65 = dma.hbm_to_vmem [thread:$0]  %s7, 1024, %s60, [#allocation6], 64, 64, 4
    $region33: #{tpu_custom_call.1} parent=1 // pred_fallthru
      _
    // Predicated region
    $region34: #{tpu_custom_call.1} parent=1 // pred_check
      _
    $region35: #{tpu_custom_call.1} parent=1 // pred_check_branch
      %67 = sbr.rel (0) target = $region37
    $region36: #{tpu_custom_call.1} parent=1 // pred_region
      _
    $region37: #{tpu_custom_call.1} parent=1 // pred_fallthru
      _
    // Predicated region
    $region38: #{tpu_custom_call.1} parent=1 // pred_check
      _
    $region39: #{tpu_custom_call.1} parent=1 // pred_check_branch
      %69 = sbr.rel (0) target = $region41
    $region40: #{tpu_custom_call.1} parent=1 // pred_region
      %70 = dma.done [#allocation3], 1024
    $region41: #{tpu_custom_call.1} parent=1 // pred_fallthru
      _
    // Predicated region
    $region42: #{tpu_custom_call.1} parent=1 // pred_check
      _
    $region43: #{tpu_custom_call.1} parent=1 // pred_check_branch
      %72 = sbr.rel (0) target = $region45
    $region44: #{tpu_custom_call.1} parent=1 // pred_region
      %73 = dma.done [#allocation6], 1024
    $region45: #{tpu_custom_call.1} parent=1 // pred_fallthru
      _
    // Predicated region
    $region46: #{tpu_custom_call.1} parent=1 // pred_check
      _
    $region47: #{tpu_custom_call.1} parent=1 // pred_check_branch
      %75 = sbr.rel (0) target = $region49
    $region48: #{tpu_custom_call.1} parent=1 // pred_region
      %76 = dma.done [#allocation6], 1024
    $region49: #{tpu_custom_call.1} parent=1 // pred_fallthru
      _
    %v78 = vld [vmem:[%s0] sm:$0xf]
    %v79 = vld [vmem:[%s0 + $0x4] sm:$0xf]
    %v80 = vld [vmem:[#allocation2] sm:$0xf]
    %v81 = vld [vmem:[#allocation2 + $0x4] sm:$0xf]
    %v82 = vld [vmem:[#allocation2 + $0x8] sm:$0xf]
    %v83 = vld [vmem:[#allocation2 + $0xc] sm:$0xf]
    %v84 = vld [vmem:[#allocation2 + $0x10] sm:$0xf]
    %v85 = vld [vmem:[#allocation2 + $0x14] sm:$0xf]
    %v86 = vld [vmem:[#allocation2 + $0x18] sm:$0xf]
    %v87 = vld [vmem:[#allocation2 + $0x1c] sm:$0xf]
    %v88 = vld [vmem:[#allocation2 + $0x20] sm:$0xf]
    %v89 = vld [vmem:[#allocation2 + $0x24] sm:$0xf]
    %v90 = vld [vmem:[#allocation2 + $0x28] sm:$0xf]
    %v91 = vld [vmem:[#allocation2 + $0x2c] sm:$0xf]
    %v92 = vld [vmem:[#allocation2 + $0x30] sm:$0xf]
    %v93 = vld [vmem:[#allocation2 + $0x34] sm:$0xf]
    %v94 = vld [vmem:[#allocation2 + $0x38] sm:$0xf]
    %v95 = vld [vmem:[#allocation2 + $0x3c] sm:$0xf]
    %v98 = vunpack.c.l.b16 %v78
    %v99 = vunpack.c.l.b16 %v79
    %v100 = vpack.c.b16 %v99, %v98
    %v118 = vunpack.c.l.b16 %v80
    %v119 = vunpack.c.l.b16 %v81
    %v120 = vunpack.c.l.b16 %v82
    %v121 = vunpack.c.l.b16 %v83
    %v122 = vunpack.c.l.b16 %v84
    %v123 = vunpack.c.l.b16 %v85
    %v124 = vunpack.c.l.b16 %v86
    %v125 = vunpack.c.l.b16 %v87
    %v126 = vunpack.c.l.b16 %v88
    %v127 = vunpack.c.l.b16 %v89
    %v128 = vunpack.c.l.b16 %v90
    %v129 = vunpack.c.l.b16 %v91
    %v130 = vunpack.c.l.b16 %v92
    %v131 = vunpack.c.l.b16 %v93
    %v132 = vunpack.c.l.b16 %v94
    %v133 = vunpack.c.l.b16 %v95
    %v134 = vpack.c.b16 %v119, %v118
    %v135 = vpack.c.b16 %v121, %v120
    %v136 = vpack.c.b16 %v123, %v122
    %v137 = vpack.c.b16 %v125, %v124
    %v138 = vpack.c.b16 %v127, %v126
    %v139 = vpack.c.b16 %v129, %v128
    %v140 = vpack.c.b16 %v131, %v130
    %v141 = vpack.c.b16 %v133, %v132
    %150 = vmatprep.subr.bf16.mxu0 0
    %151 = vmatpush1.bf16.msra.mxu0 %v134
    %152 = vmatprep.subr.bf16.mxu0 0
    %153 = vmatpush1.bf16.msra.mxu0 %v135
    %154 = vmatprep.subr.bf16.mxu0 0
    %155 = vmatpush1.bf16.msra.mxu0 %v136
    %156 = vmatprep.subr.bf16.mxu0 0
    %157 = vmatpush1.bf16.msra.mxu0 %v137
    %158 = vmatprep.subr.bf16.mxu0 0
    %159 = vmatpush1.bf16.msra.mxu0 %v138
    %160 = vmatprep.subr.bf16.mxu0 0
    %161 = vmatpush1.bf16.msra.mxu0 %v139
    %162 = vmatprep.subr.bf16.mxu0 0
    %163 = vmatpush1.bf16.msra.mxu0 %v140
    %164 = vmatprep.subr.bf16.mxu0 0
    %165 = vmatpush1.bf16.msra.mxu0 %v141
    %166 = vmatprep.subr.bf16.mxu0 0
    %167 = vmatpush1.bf16.msra.mxu0 0
    %168 = vmatprep.subr.bf16.mxu0 0
    %169 = vmatpush1.bf16.msra.mxu0 0
    %170 = vmatprep.subr.bf16.mxu0 0
    %171 = vmatpush1.bf16.msra.mxu0 0
    %172 = vmatprep.subr.bf16.mxu0 0
    %173 = vmatpush1.bf16.msra.mxu0 0
    %174 = vmatprep.subr.bf16.mxu0 0
    %175 = vmatpush1.bf16.msra.mxu0 0
    %176 = vmatprep.subr.bf16.mxu0 0
    %177 = vmatpush1.bf16.msra.mxu0 0
    %178 = vmatprep.subr.bf16.mxu0 0
    %179 = vmatpush1.bf16.msra.mxu0 0
    %180 = vmatprep.subr.bf16.mxu0 0
    %181 = vmatpush1.bf16.msra.mxu0 0
    %182 = vmatprep.mubr.bf16.mxu0 0
    %183 = vmatmul.mubr.bf16.gmra.mrb[0].mxu0 %v100
    %v184 = vpop.f32.mrb[0].mxu0
    %v185 = vadd.f32 0.0, %v184
    %v186 = vpop.f32.mrb[0].mxu0
    %v187 = vpop.f32.mrb[0].mxu0
    %v188 = vadd.f32 0.0, %v187
    %v189 = vpop.f32.mrb[0].mxu0
    %190 = vdwg.mxu0
    %v191 = vld [vmem:[%s1] sm:$0xff]
    %v192 = vld [vmem:[%s1 + $0x8] sm:$0xff]
    %v193 = vlaneseq
    %v194 = vand.u32 %v193, 127
    %195 = vset.pattern.permute.xlu0 0
    %196 = vperm.xlu0 %195, %v191
    %v197 = vpop.permute.xlu0 %196
    %198 = vset.pattern.permute.xlu0 0
    %199 = vperm.xlu0 %198, %v192
    %v200 = vpop.permute.xlu0 %199
    %vm201 = vcmp.eq.s32.totalorder %v194, %v197
    %vm202 = vcmp.eq.s32.totalorder %v194, %v200
    %v203 = vsel %vm201, 1.0, 0.0
    %v204 = vsel %vm202, 1.0, 0.0
    %v205 = vpack.c.bf16 %v204, %v203
    %v206 = vld [vmem:[%s4] sm:$0xf]
    %vm207 = vcmask 64512
    %v209 = vsel %vm207, %v205, 0
    %vm211 = vcmask 1043456
    %v213 = vsel %vm211, %v206, 0
    %215 = vmatprep.subr.bf16.mxu0 0
    %216 = vmatpush1.bf16.msra.mxu0 %v213
    %217 = vmatprep.subr.bf16.mxu0 0
    %218 = vmatpush1.bf16.msra.mxu0 0
    %219 = vmatprep.subr.bf16.mxu0 0
    %220 = vmatpush1.bf16.msra.mxu0 0
    %221 = vmatprep.subr.bf16.mxu0 0
    %222 = vmatpush1.bf16.msra.mxu0 0
    %223 = vmatprep.subr.bf16.mxu0 0
    %224 = vmatpush1.bf16.msra.mxu0 0
    %225 = vmatprep.subr.bf16.mxu0 0
    %226 = vmatpush1.bf16.msra.mxu0 0
    %227 = vmatprep.subr.bf16.mxu0 0
    %228 = vmatpush1.bf16.msra.mxu0 0
    %229 = vmatprep.subr.bf16.mxu0 0
    %230 = vmatpush1.bf16.msra.mxu0 0
    %231 = vmatprep.subr.bf16.mxu0 0
    %232 = vmatpush1.bf16.msra.mxu0 0
    %233 = vmatprep.subr.bf16.mxu0 0
    %234 = vmatpush1.bf16.msra.mxu0 0
    %235 = vmatprep.subr.bf16.mxu0 0
    %236 = vmatpush1.bf16.msra.mxu0 0
    %237 = vmatprep.subr.bf16.mxu0 0
    %238 = vmatpush1.bf16.msra.mxu0 0
    %239 = vmatprep.subr.bf16.mxu0 0
    %240 = vmatpush1.bf16.msra.mxu0 0
    %241 = vmatprep.subr.bf16.mxu0 0
    %242 = vmatpush1.bf16.msra.mxu0 0
    %243 = vmatprep.subr.bf16.mxu0 0
    %244 = vmatpush1.bf16.msra.mxu0 0
    %245 = vmatprep.subr.bf16.mxu0 0
    %246 = vmatpush1.bf16.msra.mxu0 0
    %247 = vmatprep.mubr.bf16.mxu0 0
    %248 = vmatmul.mubr.bf16.gmra.mrb[0].mxu0 %v209
    %v249 = vpop.f32.mrb[0].mxu0
    %v250 = vadd.f32 0.0, %v249
    %v251 = vpop.f32.mrb[0].mxu0
    %v252 = vpop.f32.mrb[0].mxu0
    %v253 = vadd.f32 0.0, %v252
    %v254 = vpop.f32.mrb[0].mxu0
    %255 = vdwg.mxu0
    %v256 = vld [vmem:[%s2] sm:$0xff]
    %v257 = vld [vmem:[%s2 + $0x8] sm:$0xff]
    %259 = vset.pattern.permute.xlu0 0
    %260 = vperm.xlu0 %259, %v256
    %v261 = vpop.permute.xlu0 %260
    %264 = vset.pattern.permute.xlu0 0
    %265 = vperm.xlu0 %264, %v257
    %v266 = vpop.permute.xlu0 %265
    %v268 = vmul.f32 %v185, %v261
    %v269 = vmul.f32 %v188, %v266
    %v270 = vadd.f32 %v268, %v250
    %v271 = vadd.f32 %v269, %v253
    %v272 = vpack.c.bf16 %v271, %v270
    %v273 = vld [vmem:[#allocation5] sm:$0xf]
    %v274 = vld [vmem:[#allocation5 + $0x4] sm:$0xf]
    %v275 = vld [vmem:[#allocation5 + $0x8] sm:$0xf]
    %v276 = vld [vmem:[#allocation5 + $0xc] sm:$0xf]
    %v277 = vld [vmem:[#allocation5 + $0x10] sm:$0xf]
    %v278 = vld [vmem:[#allocation5 + $0x14] sm:$0xf]
    %v279 = vld [vmem:[#allocation5 + $0x18] sm:$0xf]
    %v280 = vld [vmem:[#allocation5 + $0x1c] sm:$0xf]
    %v281 = vld [vmem:[#allocation5 + $0x20] sm:$0xf]
    %v282 = vld [vmem:[#allocation5 + $0x24] sm:$0xf]
    %v283 = vld [vmem:[#allocation5 + $0x28] sm:$0xf]
    %v284 = vld [vmem:[#allocation5 + $0x2c] sm:$0xf]
    %v285 = vld [vmem:[#allocation5 + $0x30] sm:$0xf]
    %v286 = vld [vmem:[#allocation5 + $0x34] sm:$0xf]
    %v287 = vld [vmem:[#allocation5 + $0x38] sm:$0xf]
    %v288 = vld [vmem:[#allocation5 + $0x3c] sm:$0xf]
    %v289 = vld [vmem:[%s6] sm:$0x1]
    %v291 = vlaneseq
    %v292 = vshrl.u32 %v291, 7
    %v293 = vsub.s32 0, %v292
    %v294 = vrot.slane %v289, %v293
    %v312 = vunpack.c.l.b16 %v273
    %v313 = vunpack.c.l.b16 %v274
    %v314 = vunpack.c.l.b16 %v275
    %v315 = vunpack.c.l.b16 %v276
    %v316 = vunpack.c.l.b16 %v277
    %v317 = vunpack.c.l.b16 %v278
    %v318 = vunpack.c.l.b16 %v279
    %v319 = vunpack.c.l.b16 %v280
    %v320 = vunpack.c.l.b16 %v281
    %v321 = vunpack.c.l.b16 %v282
    %v322 = vunpack.c.l.b16 %v283
    %v323 = vunpack.c.l.b16 %v284
    %v324 = vunpack.c.l.b16 %v285
    %v325 = vunpack.c.l.b16 %v286
    %v326 = vunpack.c.l.b16 %v287
    %v327 = vunpack.c.l.b16 %v288
    %v328 = vpack.c.b16 %v313, %v312
    %v329 = vpack.c.b16 %v315, %v314
    %v330 = vpack.c.b16 %v317, %v316
    %v331 = vpack.c.b16 %v319, %v318
    %v332 = vpack.c.b16 %v321, %v320
    %v333 = vpack.c.b16 %v323, %v322
    %v334 = vpack.c.b16 %v325, %v324
    %v335 = vpack.c.b16 %v327, %v326
    %344 = vmatprep.subr.bf16.mxu0 0
    %345 = vmatpush1.bf16.msra.mxu0 %v328
    %346 = vmatprep.subr.bf16.mxu0 0
    %347 = vmatpush1.bf16.msra.mxu0 %v329
    %348 = vmatprep.subr.bf16.mxu0 0
    %349 = vmatpush1.bf16.msra.mxu0 %v330
    %350 = vmatprep.subr.bf16.mxu0 0
    %351 = vmatpush1.bf16.msra.mxu0 %v331
    %352 = vmatprep.subr.bf16.mxu0 0
    %353 = vmatpush1.bf16.msra.mxu0 %v332
    %354 = vmatprep.subr.bf16.mxu0 0
    %355 = vmatpush1.bf16.msra.mxu0 %v333
    %356 = vmatprep.subr.bf16.mxu0 0
    %357 = vmatpush1.bf16.msra.mxu0 %v334
    %358 = vmatprep.subr.bf16.mxu0 0
    %359 = vmatpush1.bf16.msra.mxu0 %v335
    %360 = vmatprep.subr.bf16.mxu0 0
    %361 = vmatpush1.bf16.msra.mxu0 0
    %362 = vmatprep.subr.bf16.mxu0 0
    %363 = vmatpush1.bf16.msra.mxu0 0
    %364 = vmatprep.subr.bf16.mxu0 0
    %365 = vmatpush1.bf16.msra.mxu0 0
    %366 = vmatprep.subr.bf16.mxu0 0
    %367 = vmatpush1.bf16.msra.mxu0 0
    %368 = vmatprep.subr.bf16.mxu0 0
    %369 = vmatpush1.bf16.msra.mxu0 0
    %370 = vmatprep.subr.bf16.mxu0 0
    %371 = vmatpush1.bf16.msra.mxu0 0
    %372 = vmatprep.subr.bf16.mxu0 0
    %373 = vmatpush1.bf16.msra.mxu0 0
    %374 = vmatprep.subr.bf16.mxu0 0
    %375 = vmatpush1.bf16.msra.mxu0 0
    %376 = vmatprep.mubr.bf16.mxu0 0
    %377 = vmatmul.mubr.bf16.gmra.mrb[0].mxu0 %v272
    %v378 = vpop.f32.mrb[0].mxu0
    %v379 = vadd.f32 %v294, %v378
    %v380 = vpop.f32.mrb[0].mxu0
    %v381 = vpop.f32.mrb[0].mxu0
    %v382 = vadd.f32 %v294, %v381
    %v383 = vpop.f32.mrb[0].mxu0
    %384 = vdwg.mxu0
    %385 = vst [vmem:[#allocation8] sm:$0xff] %v379
    %386 = vst [vmem:[#allocation8 + $0x8] sm:$0xff] %v382
    %v387 = vadd.f32 %v185, %v250
    %v388 = vadd.f32 %v188, %v253
    %v389 = vpack.c.bf16 %v388, %v387
    %v390 = vld [vmem:[#allocation7] sm:$0xf]
    %v391 = vld [vmem:[#allocation7 + $0x4] sm:$0xf]
    %v392 = vld [vmem:[#allocation7 + $0x8] sm:$0xf]
    %v393 = vld [vmem:[#allocation7 + $0xc] sm:$0xf]
    %v394 = vld [vmem:[#allocation7 + $0x10] sm:$0xf]
    %v395 = vld [vmem:[#allocation7 + $0x14] sm:$0xf]
    %v396 = vld [vmem:[#allocation7 + $0x18] sm:$0xf]
    %v397 = vld [vmem:[#allocation7 + $0x1c] sm:$0xf]
    %v398 = vld [vmem:[#allocation7 + $0x20] sm:$0xf]
    %v399 = vld [vmem:[#allocation7 + $0x24] sm:$0xf]
    %v400 = vld [vmem:[#allocation7 + $0x28] sm:$0xf]
    %v401 = vld [vmem:[#allocation7 + $0x2c] sm:$0xf]
    %v402 = vld [vmem:[#allocation7 + $0x30] sm:$0xf]
    %v403 = vld [vmem:[#allocation7 + $0x34] sm:$0xf]
    %v404 = vld [vmem:[#allocation7 + $0x38] sm:$0xf]
    %v405 = vld [vmem:[#allocation7 + $0x3c] sm:$0xf]
    %v406 = vld [vmem:[%s8] sm:$0x1]
    %v408 = vlaneseq
    %v409 = vshrl.u32 %v408, 7
    %v410 = vsub.s32 0, %v409
    %v411 = vrot.slane %v406, %v410
    %v429 = vunpack.c.l.b16 %v390
    %v430 = vunpack.c.l.b16 %v391
    %v431 = vunpack.c.l.b16 %v392
    %v432 = vunpack.c.l.b16 %v393
    %v433 = vunpack.c.l.b16 %v394
    %v434 = vunpack.c.l.b16 %v395
    %v435 = vunpack.c.l.b16 %v396
    %v436 = vunpack.c.l.b16 %v397
    %v437 = vunpack.c.l.b16 %v398
    %v438 = vunpack.c.l.b16 %v399
    %v439 = vunpack.c.l.b16 %v400
    %v440 = vunpack.c.l.b16 %v401
    %v441 = vunpack.c.l.b16 %v402
    %v442 = vunpack.c.l.b16 %v403
    %v443 = vunpack.c.l.b16 %v404
    %v444 = vunpack.c.l.b16 %v405
    %v445 = vpack.c.b16 %v430, %v429
    %v446 = vpack.c.b16 %v432, %v431
    %v447 = vpack.c.b16 %v434, %v433
    %v448 = vpack.c.b16 %v436, %v435
    %v449 = vpack.c.b16 %v438, %v437
    %v450 = vpack.c.b16 %v440, %v439
    %v451 = vpack.c.b16 %v442, %v441
    %v452 = vpack.c.b16 %v444, %v443
    %461 = vmatprep.subr.bf16.mxu0 0
    %462 = vmatpush1.bf16.msra.mxu0 %v445
    %463 = vmatprep.subr.bf16.mxu0 0
    %464 = vmatpush1.bf16.msra.mxu0 %v446
    %465 = vmatprep.subr.bf16.mxu0 0
    %466 = vmatpush1.bf16.msra.mxu0 %v447
    %467 = vmatprep.subr.bf16.mxu0 0
    %468 = vmatpush1.bf16.msra.mxu0 %v448
    %469 = vmatprep.subr.bf16.mxu0 0
    %470 = vmatpush1.bf16.msra.mxu0 %v449
    %471 = vmatprep.subr.bf16.mxu0 0
    %472 = vmatpush1.bf16.msra.mxu0 %v450
    %473 = vmatprep.subr.bf16.mxu0 0
    %474 = vmatpush1.bf16.msra.mxu0 %v451
    %475 = vmatprep.subr.bf16.mxu0 0
    %476 = vmatpush1.bf16.msra.mxu0 %v452
    %477 = vmatprep.subr.bf16.mxu0 0
    %478 = vmatpush1.bf16.msra.mxu0 0
    %479 = vmatprep.subr.bf16.mxu0 0
    %480 = vmatpush1.bf16.msra.mxu0 0
    %481 = vmatprep.subr.bf16.mxu0 0
    %482 = vmatpush1.bf16.msra.mxu0 0
    %483 = vmatprep.subr.bf16.mxu0 0
    %484 = vmatpush1.bf16.msra.mxu0 0
    %485 = vmatprep.subr.bf16.mxu0 0
    %486 = vmatpush1.bf16.msra.mxu0 0
    %487 = vmatprep.subr.bf16.mxu0 0
    %488 = vmatpush1.bf16.msra.mxu0 0
    %489 = vmatprep.subr.bf16.mxu0 0
    %490 = vmatpush1.bf16.msra.mxu0 0
    %491 = vmatprep.subr.bf16.mxu0 0
    %492 = vmatpush1.bf16.msra.mxu0 0
    %493 = vmatprep.mubr.bf16.mxu0 0
    %494 = vmatmul.mubr.bf16.gmra.mrb[0].mxu0 %v389
    %v495 = vpop.f32.mrb[0].mxu0
    %v496 = vadd.f32 %v411, %v495
    %v497 = vpop.f32.mrb[0].mxu0
    %v498 = vpop.f32.mrb[0].mxu0
    %v499 = vadd.f32 %v411, %v498
    %v500 = vpop.f32.mrb[0].mxu0
    %501 = vdwg.mxu0
    %v502 = vpack.c.bf16 %v499, %v496
    %v504 = vunpack.c.l.b16 %v502
    %v505 = vunpack.c.h.b16 %v502
    %v506 = vpack.c.b16 %v504, %v504
    %v507 = vpack.c.b16 %v505, %v505
    %510 = vst [vmem:[#allocation9] sm:$0xf] %v506
    %511 = vst [vmem:[#allocation9 + $0x4] sm:$0xf] %v507
    // Predicated region
    $region50: #{tpu_custom_call.1} parent=1 // pred_check
      _
    $region51: #{tpu_custom_call.1} parent=1 // pred_check_branch
      %513 = sbr.rel (0) target = $region53
    $region52: #{tpu_custom_call.1} parent=1 // pred_region
      %s515 = ssub.s32 256, 256
      %516 = vsyncadd [#allocation4], %s515
      %s517 = sshll.u32 [#allocation8], 4
      %s518 = int_to_ptr.vmem [resolvable:$true] %s517
      %523 = dma.vmem_to_hbm [thread:$0]  %s518, 256, %s9, [#allocation4], 128, 128, 8
    $region53: #{tpu_custom_call.1} parent=1 // pred_fallthru
      _
    // Predicated region
    $region54: #{tpu_custom_call.1} parent=1 // pred_check
      _
    $region55: #{tpu_custom_call.1} parent=1 // pred_check_branch
      %525 = sbr.rel (0) target = $region57
    $region56: #{tpu_custom_call.1} parent=1 // pred_region
      %s527 = ssub.s32 128, 128
      %528 = vsyncadd [#allocation10], %s527
      %s529 = sshll.u32 [#allocation9], 4
      %s530 = int_to_ptr.vmem [resolvable:$true] %s529
      %535 = dma.vmem_to_hbm [thread:$0]  %s530, 128, %s10, [#allocation10], 64, 64, 4
    $region57: #{tpu_custom_call.1} parent=1 // pred_fallthru
      _
    // Predicated region
    $region58: #{tpu_custom_call.1} parent=1 // pred_check
      _
    $region59: #{tpu_custom_call.1} parent=1 // pred_check_branch
      %537 = sbr.rel (0) target = $region61
    $region60: #{tpu_custom_call.1} parent=1 // pred_region
      %538 = dma.done [#allocation4], 256
    $region61: #{tpu_custom_call.1} parent=1 // pred_fallthru
      _
    // Predicated region
    $region62: #{tpu_custom_call.1} parent=1 // pred_check
      _
    $region63: #{tpu_custom_call.1} parent=1 // pred_check_branch
      %540 = sbr.rel (0) target = $region65
    $region64: #{tpu_custom_call.1} parent=1 // pred_region
      %541 = dma.done [#allocation10], 128
    $region65: #{tpu_custom_call.1} parent=1 // pred_fallthru
      _
    %542 = vsyncpa [#allocation3], 1
    %543 = vsyncpa [#allocation6], 1
    %544 = vsyncpa [#allocation4], 1
    %545 = vsyncpa [#allocation10], 1

</llo_original>
